<compile_context>
chip_gen: v7x
topology: tpu7x:2x2x1
jax: 0.10.0
libtpu: 0.0.40
codegen_flags: <defaults>
</compile_context>

<pallas_src>
import jax
import jax.numpy as jnp
from jax import lax
from jax.experimental import pallas as pl
from jax.experimental.pallas import tpu as pltpu

input_size = 10
hidden_size = 20


# -------- parameter preprocessing: done ONCE, never in the per-step path -----
def prepare_params(wxh, bxh, whh, bhh, bh):
    """torch layout (out, in) -> fused kernel layout.

    W : (input_size + hidden_size, hidden_size) = [Wxh^T ; Whh^T]
    b : (1, hidden_size)                        = bxh + bhh + bh
    """
    W = jnp.concatenate([wxh.T, whh.T], axis=0).astype(jnp.float32)
    b = (bxh + bhh + bh).reshape(1, -1).astype(jnp.float32)
    return W, b


# ------------------------- single-step kernel (module forward) ---------------
def _rnn_cell_kernel(x_ref, h_ref, w_ref, b_ref, o_ref):
    # One fused MXU matmul: [x | h] @ [Wxh^T ; Whh^T], f32 accumulation.
    xh = jnp.concatenate(
        [x_ref[...].astype(jnp.float32), h_ref[...].astype(jnp.float32)],
        axis=-1)
    pre = jnp.dot(xh, w_ref[...], preferred_element_type=jnp.float32) + b_ref[...]
    o_ref[...] = jnp.tanh(pre).astype(o_ref.dtype)


def simple_rnn_cell(x, h, W, b):
    """x: (B, input_size), h: (B, hidden_size); W/b from prepare_params."""
    B = x.shape[0]
    full = lambda a: pl.BlockSpec(a.shape, lambda: tuple(0 for _ in a.shape))
    return pl.pallas_call(
        _rnn_cell_kernel,
        out_shape=jax.ShapeDtypeStruct((B, hidden_size), x.dtype),
        grid=(),  # everything fits in one vreg-scale tile; no grid needed
        in_specs=[full(x), full(h), full(W), full(b)],
        out_specs=pl.BlockSpec((B, hidden_size), lambda: (0, 0)),
    )(x, h, W, b)


# ---------------- fused-sequence kernel (time loop on the grid) --------------
def _rnn_seq_kernel(x_ref, h0_ref, w_ref, b_ref, o_ref, h_scr):
    t = pl.program_id(0)

    @pl.when(t == 0)
    def _():
        h_scr[...] = h0_ref[...].astype(jnp.float32)

    xh = jnp.concatenate(
        [x_ref[0].astype(jnp.float32), h_scr[...]], axis=-1)
    pre = jnp.dot(xh, w_ref[...], preferred_element_type=jnp.float32) + b_ref[...]
    h_new = jnp.tanh(pre)
    h_scr[...] = h_new                      # carry h in VMEM across grid steps
    o_ref[0] = h_new.astype(o_ref.dtype)    # stream per-step hidden state


def simple_rnn_sequence(x_seq, h0, W, b):
    """x_seq: (T, B, input_size), h0: (B, hidden_size) -> (T, B, hidden_size).

    Applies the same cell T times with weights, bias and the carried h kept
    resident in VMEM; only the per-step x tile and the per-step output tile
    move HBM<->VMEM each grid step.
    """
    T, B, _ = x_seq.shape
    return pl.pallas_call(
        _rnn_seq_kernel,
        out_shape=jax.ShapeDtypeStruct((T, B, hidden_size), x_seq.dtype),
        grid=(T,),
        in_specs=[
            pl.BlockSpec((1, B, input_size), lambda t: (t, 0, 0)),   # x_t
            pl.BlockSpec((B, hidden_size), lambda t: (0, 0)),        # h0 (resident)
            pl.BlockSpec(W.shape, lambda t: (0, 0)),                 # W  (resident)
            pl.BlockSpec(b.shape, lambda t: (0, 0)),                 # b  (resident)
        ],
        out_specs=pl.BlockSpec((1, B, hidden_size), lambda t: (t, 0, 0)),
        scratch_shapes=[pltpu.VMEM((B, hidden_size), jnp.float32)],
        compiler_params=pltpu.CompilerParams(
            dimension_semantics=("arbitrary",)),  # h carries across t
    )(x_seq, h0, W, b)


# --------------------------------- reference ---------------------------------
def reference_cell(x, h, wxh, bxh, whh, bhh, bh):
    return jnp.tanh(x @ wxh.T + bxh + h @ whh.T + bhh + bh)


if __name__ == "__main__":
    key = jax.random.PRNGKey(0)
    k = jax.random.split(key, 8)

    B, T = 2, 8
    x = jax.random.normal(k[0], (B, input_size), dtype=jnp.float32)
    h = jax.random.normal(k[1], (B, hidden_size), dtype=jnp.float32)
    x_seq = jax.random.normal(k[6], (T, B, input_size), dtype=jnp.float32)

    # Deterministic parameter init (PyTorch nn.Linear-style uniform bounds).
    bnd_x = 1.0 / (input_size ** 0.5)
    bnd_h = 1.0 / (hidden_size ** 0.5)
    wxh = jax.random.uniform(k[2], (hidden_size, input_size), jnp.float32, -bnd_x, bnd_x)
    bxh = jax.random.uniform(k[3], (hidden_size,), jnp.float32, -bnd_x, bnd_x)
    whh = jax.random.uniform(k[4], (hidden_size, hidden_size), jnp.float32, -bnd_h, bnd_h)
    bhh = jax.random.uniform(k[5], (hidden_size,), jnp.float32, -bnd_h, bnd_h)
    bh = jnp.zeros((hidden_size,), jnp.float32)  # nn.Parameter(torch.zeros(hidden))

    # One-time weight fusion (hoisted out of the hot path).
    W, b = prepare_params(wxh, bxh, whh, bhh, bh)

    # --- single step: exact module forward ---
    out = jax.block_until_ready(simple_rnn_cell(x, h, W, b))
    ref = reference_cell(x, h, wxh, bxh, whh, bhh, bh)
    assert out.shape == (B, hidden_size)
    assert jnp.allclose(out, ref, atol=1e-5, rtol=1e-5), "cell mismatch vs reference"

    # --- fused sequence: T applications of the cell in one pallas_call ---
    hs = jax.block_until_ready(simple_rnn_sequence(x_seq, h, W, b))

    def scan_step(hc, xt):
        hn = reference_cell(xt, hc, wxh, bxh, whh, bhh, bh)
        return hn, hn
    _, hs_ref = lax.scan(scan_step, h, x_seq)
    assert hs.shape == (T, B, hidden_size)
    assert jnp.allclose(hs, hs_ref, atol=1e-5, rtol=1e-5), "sequence mismatch vs scan reference"

    print("KERNEL_OK")
</pallas_src>

<mosaic_0001>
module attributes {stable_mosaic.version = 11 : i64} {
  func.func @_rnn_cell_kernel(%arg0: memref<2x10xf32, #tpu.memory_space<vmem>>, %arg1: memref<2x20xf32, #tpu.memory_space<vmem>>, %arg2: memref<30x20xf32, #tpu.memory_space<vmem>>, %arg3: memref<1x20xf32, #tpu.memory_space<vmem>>, %arg4: memref<2x20xf32, #tpu.memory_space<vmem>>) attributes {dimension_semantics = [], scalar_prefetch = 0 : i64, scratch_operands = 0 : i64, tpu.core_type = #tpu.core_type<tc>} {
    %c0 = arith.constant 0 : index
    %c0_0 = arith.constant 0 : index
    %0 = vector.load %arg0[%c0, %c0_0] : memref<2x10xf32, #tpu.memory_space<vmem>>, vector<2x10xf32>
    %c0_1 = arith.constant 0 : index
    %c0_2 = arith.constant 0 : index
    %1 = vector.load %arg1[%c0_1, %c0_2] : memref<2x20xf32, #tpu.memory_space<vmem>>, vector<2x20xf32>
    %2 = tpu.concatenate %0, %1 in 1 : vector<2x10xf32>, vector<2x20xf32> -> vector<2x30xf32>
    %c0_3 = arith.constant 0 : index
    %c0_4 = arith.constant 0 : index
    %3 = vector.load %arg2[%c0_3, %c0_4] : memref<30x20xf32, #tpu.memory_space<vmem>>, vector<30x20xf32>
    %cst = arith.constant dense<0.000000e+00> : vector<2x20xf32>
    %4 = tpu.matmul %2, %3, %cst {dimension_numbers = #tpu.dot_dimension_numbers<[1], [0], [0], [1], [0, 0, 1, 1], [], []>} : vector<2x30xf32>, vector<30x20xf32>, vector<2x20xf32> -> vector<2x20xf32>
    %c0_5 = arith.constant 0 : index
    %c0_6 = arith.constant 0 : index
    %5 = vector.load %arg3[%c0_5, %c0_6] : memref<1x20xf32, #tpu.memory_space<vmem>>, vector<1x20xf32>
    %6 = vector.broadcast %5 : vector<1x20xf32> to vector<2x20xf32>
    %7 = arith.addf %4, %6 : vector<2x20xf32>
    %8 = math.tanh %7 : vector<2x20xf32>
    %c0_7 = arith.constant 0 : index
    %c0_8 = arith.constant 0 : index
    %9 = vector.load %arg4[%c0_7, %c0_8] : memref<2x20xf32, #tpu.memory_space<vmem>>, vector<2x20xf32>
    tpu.vector_store %arg4[%c0_7, %c0_8], %8 {strides = array<i32>} : memref<2x20xf32, #tpu.memory_space<vmem>>, vector<2x20xf32>,
    return
  }
}

</mosaic_0001>

<llo_original>
// kernel: tpu_custom_call.1
$region0: #{tpu_custom_call.1}
  #allocation0 [shape = 'u32[]', space=smem, size = 0x4, offset = 0x4, fixed_abs, tag = 'smem constant byte address 0x4 - core index']
  #allocation1 [shape = 'u32[144,128]{1,0:T(1,128)}', space=vmem, size = 0x12000, scoped, tag = 'internal scratch']
  %s0 = inlined_call_operand.vmem [shape: f32[2,10], index: 0, kind: input, shape index: {}]
  %s1 = inlined_call_operand.vmem [shape: f32[2,20], index: 1, kind: input, shape index: {}]
  %s2 = inlined_call_operand.vmem [shape: f32[30,20], index: 2, kind: input, shape index: {}]
  %s3 = inlined_call_operand.vmem [shape: f32[1,20], index: 3, kind: input, shape index: {}]
  %s4 = inlined_call_operand.hbm [shape: f32[2,20], index: 4, kind: output, shape index: {}]
  %s5 = sld [smem:[#allocation0]]
  $region26: #{tpu_custom_call.1} parent=0
    _
  %s7 = ssub.s32 1, %s5
  %s8 = scalar_select 0, %s7, %s5
  $region1: #{tpu_custom_call.1} parent=0
    #allocation2 [shape = 'u8[1024]{0}', space=vmem, size = 0x400, scoped, tag = 'output window, operand 0, single buffered']
    #allocation3 [shape = 's32[1]{0}', space=sflag, size = 0x4, scoped, tag = 'scoped memory for tpu_custom_call.1']
    %9 = vsyncpa [#allocation3], 0
    // Predicated region
    $region2: #{tpu_custom_call.1} parent=1 // pred_check
      _
    $region3: #{tpu_custom_call.1} parent=1 // pred_check_branch
      %11 = sbr.rel (0) target = $region5
    $region4: #{tpu_custom_call.1} parent=1 // pred_region
      _
    $region5: #{tpu_custom_call.1} parent=1 // pred_fallthru
      _
    // Predicated region
    $region6: #{tpu_custom_call.1} parent=1 // pred_check
      _
    $region7: #{tpu_custom_call.1} parent=1 // pred_check_branch
      %13 = sbr.rel (0) target = $region9
    $region8: #{tpu_custom_call.1} parent=1 // pred_region
      _
    $region9: #{tpu_custom_call.1} parent=1 // pred_fallthru
      _
    // Predicated region
    $region10: #{tpu_custom_call.1} parent=1 // pred_check
      _
    $region11: #{tpu_custom_call.1} parent=1 // pred_check_branch
      %15 = sbr.rel (0) target = $region13
    $region12: #{tpu_custom_call.1} parent=1 // pred_region
      _
    $region13: #{tpu_custom_call.1} parent=1 // pred_fallthru
      _
    // Predicated region
    $region14: #{tpu_custom_call.1} parent=1 // pred_check
      _
    $region15: #{tpu_custom_call.1} parent=1 // pred_check_branch
      %17 = sbr.rel (0) target = $region17
    $region16: #{tpu_custom_call.1} parent=1 // pred_region
      _
    $region17: #{tpu_custom_call.1} parent=1 // pred_fallthru
      _
    %v18 = vld [vmem:[%s0] sm:$0x3]
    %v19 = vld [vmem:[%s1] sm:$0x3]
    %21 = vrot.lane.b32.xlu0 %v19, 10
    %v22 = vpop.permute.xlu0 %21
    %vm24 = vcmask 80896
    %v25 = vsel %vm24, %v18, %v22
    %v26 = vld [vmem:[%s2] sm:$0xff]
    %v27 = vld [vmem:[%s2 + $0x8] sm:$0xff]
    %v28 = vld [vmem:[%s2 + $0x10] sm:$0xff]
    %v29 = vld [vmem:[%s2 + $0x18] sm:$0x3f]
    %v30 = vld [vmem:[%s3] sm:$0x1]
    %v32 = vlaneseq
    %v33 = vshrl.u32 %v32, 7
    %v34 = vsub.s32 0, %v33
    %v35 = vrot.slane %v30, %v34
    %vm37 = vcmask 244736
    %v39 = vsel %vm37, %v25, 0
    %vm41 = vcmask 1045504
    %v43 = vsel %vm41, %v29, 0
    %45 = vmatprep.subr.mxu0 0.0
    %46 = vmatpush1.msra.mxu0 %v26
    %47 = vmatprep.subr.mxu0 0.0
    %48 = vmatpush1.msra.mxu0 %v27
    %49 = vmatprep.subr.mxu0 0.0
    %50 = vmatpush1.msra.mxu0 %v28
    %51 = vmatprep.subr.mxu0 0.0
    %52 = vmatpush1.msra.mxu0 %v43
    %53 = vmatprep.subr.mxu0 0.0
    %54 = vmatpush1.msra.mxu0 0.0
    %55 = vmatprep.subr.mxu0 0.0
    %56 = vmatpush1.msra.mxu0 0.0
    %57 = vmatprep.subr.mxu0 0.0
    %58 = vmatpush1.msra.mxu0 0.0
    %59 = vmatprep.subr.mxu0 0.0
    %60 = vmatpush1.msra.mxu0 0.0
    %61 = vmatprep.subr.mxu0 0.0
    %62 = vmatpush1.msra.mxu0 0.0
    %63 = vmatprep.subr.mxu0 0.0
    %64 = vmatpush1.msra.mxu0 0.0
    %65 = vmatprep.subr.mxu0 0.0
    %66 = vmatpush1.msra.mxu0 0.0
    %67 = vmatprep.subr.mxu0 0.0
    %68 = vmatpush1.msra.mxu0 0.0
    %69 = vmatprep.subr.mxu0 0.0
    %70 = vmatpush1.msra.mxu0 0.0
    %71 = vmatprep.subr.mxu0 0.0
    %72 = vmatpush1.msra.mxu0 0.0
    %73 = vmatprep.subr.mxu0 0.0
    %74 = vmatpush1.msra.mxu0 0.0
    %75 = vmatprep.subr.mxu0 0.0
    %76 = vmatpush1.msra.mxu0 0.0
    %77 = vmatprep.subr.mxu0 0.0
    %78 = vmatpush1.msra.mxu0 0.0
    %79 = vmatprep.subr.mxu0 0.0
    %80 = vmatpush1.msra.mxu0 0.0
    %81 = vmatprep.subr.mxu0 0.0
    %82 = vmatpush1.msra.mxu0 0.0
    %83 = vmatprep.subr.mxu0 0.0
    %84 = vmatpush1.msra.mxu0 0.0
    %85 = vmatprep.subr.mxu0 0.0
    %86 = vmatpush1.msra.mxu0 0.0
    %87 = vmatprep.subr.mxu0 0.0
    %88 = vmatpush1.msra.mxu0 0.0
    %89 = vmatprep.subr.mxu0 0.0
    %90 = vmatpush1.msra.mxu0 0.0
    %91 = vmatprep.subr.mxu0 0.0
    %92 = vmatpush1.msra.mxu0 0.0
    %93 = vmatprep.subr.mxu0 0.0
    %94 = vmatpush1.msra.mxu0 0.0
    %95 = vmatprep.subr.mxu0 0.0
    %96 = vmatpush1.msra.mxu0 0.0
    %97 = vmatprep.subr.mxu0 0.0
    %98 = vmatpush1.msra.mxu0 0.0
    %99 = vmatprep.subr.mxu0 0.0
    %100 = vmatpush1.msra.mxu0 0.0
    %101 = vmatprep.subr.mxu0 0.0
    %102 = vmatpush1.msra.mxu0 0.0
    %103 = vmatprep.subr.mxu0 0.0
    %104 = vmatpush1.msra.mxu0 0.0
    %105 = vmatprep.subr.mxu0 0.0
    %106 = vmatpush1.msra.mxu0 0.0
    %107 = vmatprep.subr.mxu0 0.0
    %108 = vmatpush1.msra.mxu0 0.0
    %109 = vmatprep.mubr.f32.mxu0 0.0
    %110 = vmatmul.mubr.f32.gmra.mrb[0].mxu0 %v39
    %v111 = vpop.f32.mrb[0].mxu0
    %v112 = vadd.f32 %v35, %v111
    %v113 = vpop.f32.mrb[0].mxu0
    %114 = vdwg.mxu0
    %v115 = vtanh.pop %v112
    %vm116 = vcmask 156672
    %117 = vst.msk [vmem:[#allocation2] sm:$0x3] %vm116, %v115
    // Predicated region
    $region18: #{tpu_custom_call.1} parent=1 // pred_check
      _
    $region19: #{tpu_custom_call.1} parent=1 // pred_check_branch
      %119 = sbr.rel (0) target = $region21
    $region20: #{tpu_custom_call.1} parent=1 // pred_region
      %s121 = ssub.s32 32, 32
      %122 = vsyncadd [#allocation3], %s121
      %s124 = sshll.u32 [#allocation2], 4
      %s125 = int_to_ptr.vmem [resolvable:$true] %s124
      %127 = dma.vmem_to_hbm [thread:$0]  %s125, 32, %s4, [#allocation3]
    $region21: #{tpu_custom_call.1} parent=1 // pred_fallthru
      _
    // Predicated region
    $region22: #{tpu_custom_call.1} parent=1 // pred_check
      _
    $region23: #{tpu_custom_call.1} parent=1 // pred_check_branch
      %129 = sbr.rel (0) target = $region25
    $region24: #{tpu_custom_call.1} parent=1 // pred_region
      %130 = dma.done [#allocation3], 32
    $region25: #{tpu_custom_call.1} parent=1 // pred_fallthru
      _
    %131 = vsyncpa [#allocation3], 1

</llo_original>
